<compile_context>
chip_gen: v7x
topology: tpu7x:2x2x1
jax: 0.10.0
libtpu: 0.0.40
codegen_flags: <defaults>
</compile_context>

<pallas_src>
import jax
import jax.numpy as jnp
from jax import lax
from jax.experimental import pallas as pl
from jax.experimental.pallas import tpu as pltpu

_SQRT_HALF = 0.7071067811865476


# ---------------------------------------------------------------------------
# Fused kernel: conv1(3x3,s2,p1) + erf-GELU + conv2(3x3,s2,p1) + sigmoid
# One grid step == NB batch elements, channels-last.
# ---------------------------------------------------------------------------
def _make_fused_kernel(OH2, OW2, OC, NB):
    S = OH2 * OW2          # conv2 output pixels per image
    G = 4 * S              # conv1 output pixels per image (4 parity groups)

    def kernel(p_ref,      # (NB*G, 9)     conv1 im2col rows, (rp,cp,oh2,ow2) order
               w1_ref,     # (9, OC)       conv1 weight, tap = 3*kh + kw
               b1_ref,     # (1, OC)
               w2r_ref,    # (3, 3*OC, OC) conv2 weight, row-tap major, [kw*OC + c]
               b2_ref,     # (1, OC)
               o_ref,      # (NB*S, OC)
               gbuf_ref):  # VMEM scratch (NB*G, OC): GELU(conv1) parity-grouped
        # ---- conv1 (Cin=1, K=9) + exact-erf GELU: ONE dot, one full store ----
        y = jnp.dot(p_ref[...], w1_ref[...],
                    preferred_element_type=jnp.float32) + b1_ref[...]
        gbuf_ref[...] = (y * 0.5) * (lax.erf(y * _SQRT_HALF) + 1.0)

        # Boundary masks for taps that reach into conv2's zero padding.
        ridx = lax.broadcasted_iota(jnp.int32, (S, 1), 0)
        col_ok = (ridx % OW2) != 0          # ow2 >= 1
        row_ok = ridx >= OW2                # oh2 >= 1

        # ---- conv2: per image, 3 dots of (S, 3*OC) @ (3*OC, OC) ----
        # Group (rp, cp) of gbuf holds v6[2a+rp, 2b+cp] at local row a*OW2 + b.
        # Tap (i, j) of the stride-2 conv reads v6[2*oh2+i-1, 2*ow2+j-1], i.e.
        # group (rp=|i-1|>0, cp=|j-1|>0) shifted by OW2*(i==0) + (j==0) rows,
        # with zeros where the padded border is touched.
        for b in range(NB):
            off = b * G
            acc = None
            for i in range(3):
                di = i - 1
                parts = []
                for j in range(3):
                    dj = j - 1
                    rp = 0 if di == 0 else 1
                    cp = 0 if dj == 0 else 1
                    shift = (OW2 if di == -1 else 0) + (1 if dj == -1 else 0)
                    start = off + (rp * 2 + cp) * S - shift
                    lhs = gbuf_ref[start:start + S, :]          # (S, OC)
                    if di == -1 and dj == -1:
                        lhs = jnp.where(row_ok & col_ok, lhs, 0.0)
                    elif di == -1:
                        lhs = jnp.where(row_ok, lhs, 0.0)
                    elif dj == -1:
                        lhs = jnp.where(col_ok, lhs, 0.0)
                    parts.append(lhs)
                lhs_i = jnp.concatenate(parts, axis=1)          # (S, 3*OC)
                d = jnp.dot(lhs_i, w2r_ref[i],
                            preferred_element_type=jnp.float32)
                acc = d if acc is None else acc + d
            # relu(sigmoid(.)) == sigmoid(.)  (sigmoid is strictly positive)
            o_ref[b * S:(b + 1) * S, :] = jax.nn.sigmoid(
                acc + b2_ref[...]).astype(o_ref.dtype)

    return kernel


# ---------------------------------------------------------------------------
# Host-side glue (tiny): im2col of the 1-channel input, parity-grouped rows.
# ---------------------------------------------------------------------------
def _conv1_patches_grouped(x, OH1, OW1):
    """(N,1,H,W) -> (N*4*OH2*OW2, 9) im2col rows of the 3x3/stride-2/pad-1
    conv over the single input channel, ordered (batch, row-par, col-par,
    oh2, ow2)."""
    N = x.shape[0]
    OH2, OW2 = OH1 // 2, OW1 // 2
    xp = jnp.pad(x[:, 0], ((0, 0), (1, 1), (1, 1)))
    taps = [xp[:, i:i + 2 * OH1:2, j:j + 2 * OW1:2]
            for i in range(3) for j in range(3)]
    p = jnp.stack(taps, axis=-1)                       # (N, OH1, OW1, 9)
    p = p.reshape(N, OH2, 2, OW2, 2, 9)
    p = p.transpose(0, 2, 4, 1, 3, 5)                  # (N, rp, cp, a, b, 9)
    return p.reshape(N * 4 * OH2 * OW2, 9)


def pack_params(w1, b1, w2, b2):
    """One-time repack of PyTorch-layout conv params into kernel layout."""
    OC = w1.shape[0]
    w1_2d = w1.reshape(OC, 9).T                        # (9, OC), tap = 3*kh + kw
    # conv2 weight: (O, C, kh, kw) -> (kh, kw*C, O): row index = kw*OC + c
    w2r = jnp.transpose(w2, (2, 3, 1, 0)).reshape(3, 3 * OC, OC)
    return dict(w1_2d=w1_2d, b1_2d=b1.reshape(1, OC),
                w2r=w2r, b2_2d=b2.reshape(1, OC))


def model_forward(x, packed, *, batch_block=None):
    N, Cin, H, W = x.shape
    assert Cin == 1
    # parity scheme needs even conv1/conv2 output sizes
    assert H % 4 == 0 and W % 4 == 0, (H, W)
    OC = packed["w1_2d"].shape[1]
    OH1, OW1 = H // 2, W // 2
    OH2, OW2 = OH1 // 2, OW1 // 2
    S = OH2 * OW2

    # Batch elements per grid step.  Default keeps >= 2 grid steps so v7x's
    # two TensorCores are both busy; on v5e/v6e (single TC) pass batch_block=N
    # to merge everything into one step and avoid weight re-DMAs.
    if batch_block is None:
        NB = N // 2 if (N % 2 == 0 and N >= 4) else 1
    else:
        NB = batch_block
    assert N % NB == 0, (N, NB)

    patches = _conv1_patches_grouped(x, OH1, OW1)      # (N*4*S, 9)
    kernel = _make_fused_kernel(OH2, OW2, OC, NB)

    out2d = pl.pallas_call(
        kernel,
        out_shape=jax.ShapeDtypeStruct((N * S, OC), x.dtype),
        grid_spec=pltpu.PrefetchScalarGridSpec(
            num_scalar_prefetch=0,
            grid=(N // NB,),
            in_specs=[
                pl.BlockSpec((NB * 4 * S, 9), lambda n: (n, 0)),
                pl.BlockSpec((9, OC), lambda n: (0, 0)),
                pl.BlockSpec((1, OC), lambda n: (0, 0)),
                pl.BlockSpec((3, 3 * OC, OC), lambda n: (0, 0, 0)),
                pl.BlockSpec((1, OC), lambda n: (0, 0)),
            ],
            out_specs=pl.BlockSpec((NB * S, OC), lambda n: (n, 0)),
            scratch_shapes=[pltpu.VMEM((NB * 4 * S, OC), jnp.float32)],
        ),
        compiler_params=pltpu.CompilerParams(
            dimension_semantics=("parallel",)),
    )(patches, packed["w1_2d"], packed["b1_2d"], packed["w2r"],
      packed["b2_2d"])

    # single layout change at the very end: channels-last -> NCHW
    return out2d.reshape(N, OH2, OW2, OC).transpose(0, 3, 1, 2)


# ---------------------------------------------------------------------------
# Pure-JAX reference for correctness checking
# ---------------------------------------------------------------------------
def _reference_forward(x, w1, b1, w2, b2):
    def conv(z, w, b):
        y = lax.conv_general_dilated(
            z, w, window_strides=(2, 2), padding=((1, 1), (1, 1)),
            dimension_numbers=("NCHW", "OIHW", "NCHW"),
            precision=lax.Precision.HIGHEST)
        return y + b.reshape(1, -1, 1, 1)

    v1 = conv(x, w1, b1)
    v6 = (v1 * 0.5) * (lax.erf(v1 * _SQRT_HALF) + 1.0)
    v7 = jax.nn.sigmoid(conv(v6, w2, b2))
    return jnp.maximum(v7, 0.0)


if __name__ == "__main__":
    key = jax.random.PRNGKey(0)
    kx, k1, k2, k3, k4 = jax.random.split(key, 5)

    # Small shapes consistent with the module: N=2, Cin=1, 16x16 spatial, OC=128
    N, CIN, H, W, OC = 2, 1, 16, 16, 128
    x = jax.random.normal(kx, (N, CIN, H, W), jnp.float32)
    w1 = jax.random.normal(k1, (OC, CIN, 3, 3), jnp.float32) * 0.1
    b1 = jax.random.normal(k2, (OC,), jnp.float32) * 0.01
    w2 = jax.random.normal(k3, (OC, OC, 3, 3), jnp.float32) * 0.02
    b2 = jax.random.normal(k4, (OC,), jnp.float32) * 0.01

    packed = pack_params(w1, b1, w2, b2)          # one-time weight repack
    out = jax.jit(model_forward)(x, packed)
    out = jax.block_until_ready(out)
    assert out.shape == (N, OC, 4, 4), out.shape  # 16 -> 8 -> 4 spatial

    ref = jax.block_until_ready(_reference_forward(x, w1, b1, w2, b2))
    err = float(jnp.max(jnp.abs(out - ref)))
    assert jnp.allclose(out, ref, atol=2e-3, rtol=2e-3), err

    print("KERNEL_OK")
</pallas_src>

<mosaic_0001>
module attributes {stable_mosaic.version = 11 : i64} {
  func.func @kernel(%arg0: i32, %arg1: memref<64x9xf32, #tpu.memory_space<vmem>>, %arg2: memref<9x128xf32, #tpu.memory_space<vmem>>, %arg3: memref<1x128xf32, #tpu.memory_space<vmem>>, %arg4: memref<3x384x128xf32, #tpu.memory_space<vmem>>, %arg5: memref<1x128xf32, #tpu.memory_space<vmem>>, %arg6: memref<16x128xf32, #tpu.memory_space<vmem>>, %arg7: memref<64x128xf32, #tpu.memory_space<vmem>>) attributes {dimension_semantics = [#tpu.dimension_semantics<parallel>], iteration_bounds = array<i64: 2>, scalar_prefetch = 0 : i64, scratch_operands = 1 : i64, tpu.core_type = #tpu.core_type<tc>, window_params = [{transform_indices = @transform_0, window_bounds = array<i64: 64, 9>}, {pipeline_mode = #tpu.pipeline_mode<synchronous>, transform_indices = @transform_1, window_bounds = array<i64: 9, 128>}, {pipeline_mode = #tpu.pipeline_mode<synchronous>, transform_indices = @transform_2, window_bounds = array<i64: 1, 128>}, {pipeline_mode = #tpu.pipeline_mode<synchronous>, transform_indices = @transform_3, window_bounds = array<i64: 3, 384, 128>}, {pipeline_mode = #tpu.pipeline_mode<synchronous>, transform_indices = @transform_4, window_bounds = array<i64: 1, 128>}, {transform_indices = @transform_5, window_bounds = array<i64: 16, 128>}]} {
    %c0 = arith.constant 0 : index
    %c0_0 = arith.constant 0 : index
    %0 = vector.load %arg1[%c0, %c0_0] : memref<64x9xf32, #tpu.memory_space<vmem>>, vector<64x9xf32>
    %c0_1 = arith.constant 0 : index
    %c0_2 = arith.constant 0 : index
    %1 = vector.load %arg2[%c0_1, %c0_2] : memref<9x128xf32, #tpu.memory_space<vmem>>, vector<9x128xf32>
    %cst = arith.constant dense<0.000000e+00> : vector<64x128xf32>
    %2 = tpu.matmul %0, %1, %cst {dimension_numbers = #tpu.dot_dimension_numbers<[1], [0], [0], [1], [0, 0, 1, 1], [], []>} : vector<64x9xf32>, vector<9x128xf32>, vector<64x128xf32> -> vector<64x128xf32>
    %c0_3 = arith.constant 0 : index
    %c0_4 = arith.constant 0 : index
    %3 = vector.load %arg3[%c0_3, %c0_4] : memref<1x128xf32, #tpu.memory_space<vmem>>, vector<1x128xf32>
    %4 = vector.broadcast %3 : vector<1x128xf32> to vector<64x128xf32>
    %5 = arith.addf %2, %4 : vector<64x128xf32>
    %cst_5 = arith.constant 5.000000e-01 : f32
    %6 = vector.broadcast %cst_5 : f32 to vector<64x128xf32>
    %7 = arith.mulf %5, %6 : vector<64x128xf32>
    %cst_6 = arith.constant 0.707106769 : f32
    %8 = vector.broadcast %cst_6 : f32 to vector<64x128xf32>
    %9 = arith.mulf %5, %8 : vector<64x128xf32>
    %10 = math.erf %9 : vector<64x128xf32>
    %cst_7 = arith.constant 1.000000e+00 : f32
    %11 = vector.broadcast %cst_7 : f32 to vector<64x128xf32>
    %12 = arith.addf %10, %11 : vector<64x128xf32>
    %13 = arith.mulf %7, %12 : vector<64x128xf32>
    %c0_8 = arith.constant 0 : index
    %c0_9 = arith.constant 0 : index
    %14 = vector.load %arg7[%c0_8, %c0_9] : memref<64x128xf32, #tpu.memory_space<vmem>>, vector<64x128xf32>
    tpu.vector_store %arg7[%c0_8, %c0_9], %13 {strides = array<i32>} : memref<64x128xf32, #tpu.memory_space<vmem>>, vector<64x128xf32>,
    %15 = tpu.iota {dimensions = array<i32: 0>} : vector<16x1xi32>
    %c4_i32 = arith.constant 4 : i32
    %c0_i32 = arith.constant 0 : i32
    %16 = arith.cmpi eq, %c4_i32, %c0_i32 : i32
    %c1_i32 = arith.constant 1 : i32
    %17 = arith.select %16, %c1_i32, %c4_i32 : i32
    %18 = vector.broadcast %17 : i32 to vector<16x1xi32>
    %19 = arith.remsi %15, %18 : vector<16x1xi32>
    %c0_i32_10 = arith.constant 0 : i32
    %20 = vector.broadcast %c0_i32_10 : i32 to vector<16x1xi32>
    %21 = arith.cmpi ne, %19, %20 : vector<16x1xi32>
    %c0_i32_11 = arith.constant 0 : i32
    %22 = vector.broadcast %c0_i32_11 : i32 to vector<16x1xi32>
    %23 = arith.cmpi slt, %19, %22 : vector<16x1xi32>
    %c0_i32_12 = arith.constant 0 : i32
    %24 = arith.cmpi slt, %17, %c0_i32_12 : i32
    %25 = vector.broadcast %24 : i1 to vector<16x1xi1>
    %26 = vector.broadcast %25 : vector<16x1xi1> to vector<16x1xi1>
    %27 = arith.xori %23, %26 : vector<16x1xi1>
    %28 = arith.andi %27, %21 : vector<16x1xi1>
    %29 = vector.broadcast %17 : i32 to vector<16x1xi32>
    %30 = arith.addi %19, %29 : vector<16x1xi32>
    %31 = arith.select %28, %30, %19 : vector<16x1xi1>, vector<16x1xi32>
    %c0_i32_13 = arith.constant 0 : i32
    %32 = vector.broadcast %c0_i32_13 : i32 to vector<16x1xi32>
    %33 = arith.cmpi ne, %31, %32 : vector<16x1xi32>
    %c4_i32_14 = arith.constant 4 : i32
    %34 = vector.broadcast %c4_i32_14 : i32 to vector<16x1xi32>
    %35 = arith.cmpi sge, %15, %34 : vector<16x1xi32>
    %c43 = arith.constant 43 : index
    %c0_15 = arith.constant 0 : index
    %36 = vector.load %arg7[%c43, %c0_15] : memref<64x128xf32, #tpu.memory_space<vmem>>, vector<16x128xf32>
    %37 = arith.andi %35, %33 : vector<16x1xi1>
    %cst_16 = arith.constant 0.000000e+00 : f32
    %38 = vector.shape_cast %37 : vector<16x1xi1> to vector<16x1xi1>
    %39 = vector.broadcast %38 : vector<16x1xi1> to vector<16x128xi1>
    %40 = vector.broadcast %cst_16 : f32 to vector<16x128xf32>
    %41 = arith.select %39, %36, %40 : vector<16x128xi1>, vector<16x128xf32>
    %c28 = arith.constant 28 : index
    %c0_17 = arith.constant 0 : index
    %42 = vector.load %arg7[%c28, %c0_17] : memref<64x128xf32, #tpu.memory_space<vmem>>, vector<16x128xf32>
    %cst_18 = arith.constant 0.000000e+00 : f32
    %43 = vector.shape_cast %35 : vector<16x1xi1> to vector<16x1xi1>
    %44 = vector.broadcast %43 : vector<16x1xi1> to vector<16x128xi1>
    %45 = vector.broadcast %cst_18 : f32 to vector<16x128xf32>
    %46 = arith.select %44, %42, %45 : vector<16x128xi1>, vector<16x128xf32>
    %c44 = arith.constant 44 : index
    %c0_19 = arith.constant 0 : index
    %47 = vector.load %arg7[%c44, %c0_19] : memref<64x128xf32, #tpu.memory_space<vmem>>, vector<16x128xf32>
    %cst_20 = arith.constant 0.000000e+00 : f32
    %48 = vector.shape_cast %35 : vector<16x1xi1> to vector<16x1xi1>
    %49 = vector.broadcast %48 : vector<16x1xi1> to vector<16x128xi1>
    %50 = vector.broadcast %cst_20 : f32 to vector<16x128xf32>
    %51 = arith.select %49, %47, %50 : vector<16x128xi1>, vector<16x128xf32>
    %52 = tpu.concatenate %41, %46, %51 in 1 : vector<16x128xf32>, vector<16x128xf32>, vector<16x128xf32> -> vector<16x384xf32>
    %c0_21 = arith.constant 0 : index
    %c0_22 = arith.constant 0 : index
    %c0_23 = arith.constant 0 : index
    %53 = vector.load %arg4[%c0_21, %c0_22, %c0_23] : memref<3x384x128xf32, #tpu.memory_space<vmem>>, vector<1x384x128xf32>
    %54 = vector.shape_cast %53 : vector<1x384x128xf32> to vector<384x128xf32>
    %cst_24 = arith.constant dense<0.000000e+00> : vector<16x128xf32>
    %55 = tpu.matmul %52, %54, %cst_24 {dimension_numbers = #tpu.dot_dimension_numbers<[1], [0], [0], [1], [0, 0, 1, 1], [], []>} : vector<16x384xf32>, vector<384x128xf32>, vector<16x128xf32> -> vector<16x128xf32>
    %c15 = arith.constant 15 : index
    %c0_25 = arith.constant 0 : index
    %56 = vector.load %arg7[%c15, %c0_25] : memref<64x128xf32, #tpu.memory_space<vmem>>, vector<16x128xf32>
    %cst_26 = arith.constant 0.000000e+00 : f32
    %57 = vector.shape_cast %33 : vector<16x1xi1> to vector<16x1xi1>
    %58 = vector.broadcast %57 : vector<16x1xi1> to vector<16x128xi1>
    %59 = vector.broadcast %cst_26 : f32 to vector<16x128xf32>
    %60 = arith.select %58, %56, %59 : vector<16x128xi1>, vector<16x128xf32>
    %c0_27 = arith.constant 0 : index
    %c0_28 = arith.constant 0 : index
    %61 = vector.load %arg7[%c0_27, %c0_28] : memref<64x128xf32, #tpu.memory_space<vmem>>, vector<16x128xf32>
    %c16 = arith.constant 16 : index
    %c0_29 = arith.constant 0 : index
    %62 = vector.load %arg7[%c16, %c0_29] : memref<64x128xf32, #tpu.memory_space<vmem>>, vector<16x128xf32>
    %63 = tpu.concatenate %60, %61, %62 in 1 : vector<16x128xf32>, vector<16x128xf32>, vector<16x128xf32> -> vector<16x384xf32>
    %c1 = arith.constant 1 : index
    %c0_30 = arith.constant 0 : index
    %c0_31 = arith.constant 0 : index
    %64 = vector.load %arg4[%c1, %c0_30, %c0_31] : memref<3x384x128xf32, #tpu.memory_space<vmem>>, vector<1x384x128xf32>
    %65 = vector.shape_cast %64 : vector<1x384x128xf32> to vector<384x128xf32>
    %cst_32 = arith.constant dense<0.000000e+00> : vector<16x128xf32>
    %66 = tpu.matmul %63, %65, %cst_32 {dimension_numbers = #tpu.dot_dimension_numbers<[1], [0], [0], [1], [0, 0, 1, 1], [], []>} : vector<16x384xf32>, vector<384x128xf32>, vector<16x128xf32> -> vector<16x128xf32>
    %67 = arith.addf %55, %66 : vector<16x128xf32>
    %c47 = arith.constant 47 : index
    %c0_33 = arith.constant 0 : index
    %68 = vector.load %arg7[%c47, %c0_33] : memref<64x128xf32, #tpu.memory_space<vmem>>, vector<16x128xf32>
    %cst_34 = arith.constant 0.000000e+00 : f32
    %69 = vector.shape_cast %33 : vector<16x1xi1> to vector<16x1xi1>
    %70 = vector.broadcast %69 : vector<16x1xi1> to vector<16x128xi1>
    %71 = vector.broadcast %cst_34 : f32 to vector<16x128xf32>
    %72 = arith.select %70, %68, %71 : vector<16x128xi1>, vector<16x128xf32>
    %c32 = arith.constant 32 : index
    %c0_35 = arith.constant 0 : index
    %73 = vector.load %arg7[%c32, %c0_35] : memref<64x128xf32, #tpu.memory_space<vmem>>, vector<16x128xf32>
    %c48 = arith.constant 48 : index
    %c0_36 = arith.constant 0 : index
    %74 = vector.load %arg7[%c48, %c0_36] : memref<64x128xf32, #tpu.memory_space<vmem>>, vector<16x128xf32>
    %75 = tpu.concatenate %72, %73, %74 in 1 : vector<16x128xf32>, vector<16x128xf32>, vector<16x128xf32> -> vector<16x384xf32>
    %c2 = arith.constant 2 : index
    %c0_37 = arith.constant 0 : index
    %c0_38 = arith.constant 0 : index
    %76 = vector.load %arg4[%c2, %c0_37, %c0_38] : memref<3x384x128xf32, #tpu.memory_space<vmem>>, vector<1x384x128xf32>
    %77 = vector.shape_cast %76 : vector<1x384x128xf32> to vector<384x128xf32>
    %cst_39 = arith.constant dense<0.000000e+00> : vector<16x128xf32>
    %78 = tpu.matmul %75, %77, %cst_39 {dimension_numbers = #tpu.dot_dimension_numbers<[1], [0], [0], [1], [0, 0, 1, 1], [], []>} : vector<16x384xf32>, vector<384x128xf32>, vector<16x128xf32> -> vector<16x128xf32>
    %79 = arith.addf %67, %78 : vector<16x128xf32>
    %c0_40 = arith.constant 0 : index
    %c0_41 = arith.constant 0 : index
    %80 = vector.load %arg5[%c0_40, %c0_41] : memref<1x128xf32, #tpu.memory_space<vmem>>, vector<1x128xf32>
    %81 = vector.broadcast %80 : vector<1x128xf32> to vector<16x128xf32>
    %82 = arith.addf %79, %81 : vector<16x128xf32>
    %83 = arith.negf %82 : vector<16x128xf32>
    %84 = math.exp %83 : vector<16x128xf32>
    %cst_42 = arith.constant 1.000000e+00 : f32
    %85 = vector.broadcast %cst_42 : f32 to vector<16x128xf32>
    %86 = arith.addf %85, %84 : vector<16x128xf32>
    %87 = arith.divf %85, %86 : vector<16x128xf32>
    %c0_43 = arith.constant 0 : index
    %c0_44 = arith.constant 0 : index
    %88 = vector.load %arg6[%c0_43, %c0_44] : memref<16x128xf32, #tpu.memory_space<vmem>>, vector<16x128xf32>
    tpu.vector_store %arg6[%c0_43, %c0_44], %87 {strides = array<i32>} : memref<16x128xf32, #tpu.memory_space<vmem>>, vector<16x128xf32>,
    return
  }
  func.func @transform_0(%arg0: i32) -> (i32, i32) {
    %c0_i32 = arith.constant 0 : i32
    %c0_i32_0 = arith.constant 0 : i32
    return %arg0, %c0_i32 : i32, i32
  }
  func.func @transform_1(%arg0: i32) -> (i32, i32) {
    %c0_i32 = arith.constant 0 : i32
    %c0_i32_0 = arith.constant 0 : i32
    %c0_i32_1 = arith.constant 0 : i32
    return %c0_i32, %c0_i32_0 : i32, i32
  }
  func.func @transform_2(%arg0: i32) -> (i32, i32) {
    %c0_i32 = arith.constant 0 : i32
    %c0_i32_0 = arith.constant 0 : i32
    %c0_i32_1 = arith.constant 0 : i32
    return %c0_i32, %c0_i32_0 : i32, i32
  }
  func.func @transform_3(%arg0: i32) -> (i32, i32, i32) {
    %c0_i32 = arith.constant 0 : i32
    %c0_i32_0 = arith.constant 0 : i32
    %c0_i32_1 = arith.constant 0 : i32
    %c0_i32_2 = arith.constant 0 : i32
    return %c0_i32, %c0_i32_0, %c0_i32_1 : i32, i32, i32
  }
  func.func @transform_4(%arg0: i32) -> (i32, i32) {
    %c0_i32 = arith.constant 0 : i32
    %c0_i32_0 = arith.constant 0 : i32
    %c0_i32_1 = arith.constant 0 : i32
    return %c0_i32, %c0_i32_0 : i32, i32
  }
  func.func @transform_5(%arg0: i32) -> (i32, i32) {
    %c0_i32 = arith.constant 0 : i32
    %c0_i32_0 = arith.constant 0 : i32
    return %arg0, %c0_i32 : i32, i32
  }
}

</mosaic_0001>

<llo_original>
// kernel: model_forward.1
$region0: #{model_forward.1}
  #allocation0 [shape = 'u32[]', space=smem, size = 0x4, offset = 0x4, fixed_abs, tag = 'smem constant byte address 0x4 - core index']
  #allocation1 [shape = 'u32[144,128]{1,0:T(1,128)}', space=vmem, size = 0x12000, scoped, tag = 'internal scratch']
  #allocation2 [shape = 'f32[64,128]{1,0:T(8,128)}', space=vmem, size = 0x8000, scoped, tag = 'scratch operand']
  %s0 = inlined_call_operand.vmem [shape: f32[128,9], index: 0, kind: input, shape index: {}]
  %s1 = inlined_call_operand.vmem [shape: f32[9,128], index: 1, kind: input, shape index: {}]
  %s2 = inlined_call_operand.vmem [shape: f32[1,128], index: 2, kind: input, shape index: {}]
  %s3 = inlined_call_operand.vmem [shape: f32[3,384,128], index: 3, kind: input, shape index: {}]
  %s4 = inlined_call_operand.vmem [shape: f32[1,128], index: 4, kind: input, shape index: {}]
  %s5 = inlined_call_operand.hbm [shape: f32[32,128], index: 5, kind: output, shape index: {}]
  %s6 = sld [smem:[#allocation0]]
  $region53: #{model_forward.1} parent=0
    _
  %s8 = ssub.s32 1, %s6
  %s9 = scalar_select 0, %s8, %s6
  $region1: #{model_forward.1} parent=0
    #allocation3 [shape = 'u8[16384]{0}', space=vmem, size = 0x4000, scoped, tag = 'output window, operand 0']
    #allocation4 [shape = 's32[2]{0}', space=sflag, size = 0x8, scoped, tag = 'scoped memory for model_forward.1']
    %10 = vsyncpa [#allocation4], 0
    %s11 = scalar_lea.sflag [#allocation4], 1
    %12 = vsyncpa %s11, 0
    loop: start=0, step=1, limit=4
    $region2: #{model_forward.1} parent=1 // loop_pre_header
      _
    $region3: #{model_forward.1} parent=1 // loop_header
      %s14 = sphi 0, %s18
      %p15 = scmp.ge.s32.totalorder %s14, 4
      %s24 = sphi 0, %s26
      %s27 = sphi 0, %s24
      %s28 = sphi 0, %s27
      %s44 = sphi 0, %s28
      %s48 = sphi 0, %s48
      %s50 = sphi 0, %s48
      %s51 = sphi 0, %s50
      %s65 = sphi 0, %s51
      %s69 = sphi 0, %s69
      %s71 = sphi 0, %s69
      %s72 = sphi 0, %s71
      %s86 = sphi 0, %s72
      %s90 = sphi 0, %s90
      %s92 = sphi 0, %s90
      %s93 = sphi 0, %s92
      %s107 = sphi 0, %s93
      %s111 = sphi 0, %s111
      %s113 = sphi 0, %s111
      %s114 = sphi 0, %s113
      %s128 = sphi 0, %s114
      %s134 = sphi 0, %s136
      %s137 = sphi 0, %s134
      %s138 = sphi 0, %s137
      %s154 = sphi 0, %s138
    $region4: #{model_forward.1} parent=1 // loop_header_branch
      %17 = sbr.rel (%p15) target = $region8
    $region5: #{model_forward.1} parent=1 // loop_body
      %s19 = ssub.s32 %s14, 1
      %s20 = ssub.s32 %s14, 2
      %s21 = sadd.s32 %s14, 1
      %s22 = ssub.s32 %s14, %s21
      %p23 = scmp.eq.s32.totalorder %s22, 0
      %s25 = sadd.s32 %s24, 1
      %s26 = scalar_select %p23, %s24, %s25
      %p29 = pneg %p23
      %p30 = scmp.eq.s32.totalorder %s14, 1
      %p31 = por %p29, %p30
      %p32 = scmp.ne.s32.totalorder %s24, %s27
      %p33 = scmp.eq.s32.totalorder %s14, 0
      %p34 = por %p32, %p33
      %p35 = scmp.ne.s32.totalorder %s24, %s27
      %p36 = scmp.eq.s32.totalorder %s19, 1
      %p37 = por %p35, %p36
      %p38 = scmp.ne.s32.totalorder %s27, %s28
      %p39 = scmp.eq.s32.totalorder %s19, 0
      %p40 = por %p38, %p39
      %p41 = scmp.ne.s32.totalorder %s27, %s28
      %p42 = scmp.eq.s32.totalorder %s20, 1
      %p43 = por %p41, %p42
      %p45 = scmp.ne.s32.totalorder %s28, %s44
      %p46 = scmp.eq.s32.totalorder %s20, 0
      %p47 = por %p45, %p46
      %s49 = sadd.s32 %s48, 1
      %p52 = scmp.eq.s32.totalorder %s14, 1
      %p53 = scmp.ne.s32.totalorder %s48, %s50
      %p54 = scmp.eq.s32.totalorder %s14, 0
      %p55 = por %p53, %p54
      %p56 = scmp.ne.s32.totalorder %s48, %s50
      %p57 = scmp.eq.s32.totalorder %s19, 1
      %p58 = por %p56, %p57
      %p59 = scmp.ne.s32.totalorder %s50, %s51
      %p60 = scmp.eq.s32.totalorder %s19, 0
      %p61 = por %p59, %p60
      %p62 = scmp.ne.s32.totalorder %s50, %s51
      %p63 = scmp.eq.s32.totalorder %s20, 1
      %p64 = por %p62, %p63
      %p66 = scmp.ne.s32.totalorder %s51, %s65
      %p67 = scmp.eq.s32.totalorder %s20, 0
      %p68 = por %p66, %p67
      %s70 = sadd.s32 %s69, 1
      %p73 = scmp.eq.s32.totalorder %s14, 1
      %p74 = scmp.ne.s32.totalorder %s69, %s71
      %p75 = scmp.eq.s32.totalorder %s14, 0
      %p76 = por %p74, %p75
      %p77 = scmp.ne.s32.totalorder %s69, %s71
      %p78 = scmp.eq.s32.totalorder %s19, 1
      %p79 = por %p77, %p78
      %p80 = scmp.ne.s32.totalorder %s71, %s72
      %p81 = scmp.eq.s32.totalorder %s19, 0
      %p82 = por %p80, %p81
      %p83 = scmp.ne.s32.totalorder %s71, %s72
      %p84 = scmp.eq.s32.totalorder %s20, 1
      %p85 = por %p83, %p84
      %p87 = scmp.ne.s32.totalorder %s72, %s86
      %p88 = scmp.eq.s32.totalorder %s20, 0
      %p89 = por %p87, %p88
      %s91 = sadd.s32 %s90, 1
      %p94 = scmp.eq.s32.totalorder %s14, 1
      %p95 = scmp.ne.s32.totalorder %s90, %s92
      %p96 = scmp.eq.s32.totalorder %s14, 0
      %p97 = por %p95, %p96
      %p98 = scmp.ne.s32.totalorder %s90, %s92
      %p99 = scmp.eq.s32.totalorder %s19, 1
      %p100 = por %p98, %p99
      %p101 = scmp.ne.s32.totalorder %s92, %s93
      %p102 = scmp.eq.s32.totalorder %s19, 0
      %p103 = por %p101, %p102
      %p104 = scmp.ne.s32.totalorder %s92, %s93
      %p105 = scmp.eq.s32.totalorder %s20, 1
      %p106 = por %p104, %p105
      %p108 = scmp.ne.s32.totalorder %s93, %s107
      %p109 = scmp.eq.s32.totalorder %s20, 0
      %p110 = por %p108, %p109
      %s112 = sadd.s32 %s111, 1
      %p115 = scmp.eq.s32.totalorder %s14, 1
      %p116 = scmp.ne.s32.totalorder %s111, %s113
      %p117 = scmp.eq.s32.totalorder %s14, 0
      %p118 = por %p116, %p117
      %p119 = scmp.ne.s32.totalorder %s111, %s113
      %p120 = scmp.eq.s32.totalorder %s19, 1
      %p121 = por %p119, %p120
      %p122 = scmp.ne.s32.totalorder %s113, %s114
      %p123 = scmp.eq.s32.totalorder %s19, 0
      %p124 = por %p122, %p123
      %p125 = scmp.ne.s32.totalorder %s113, %s114
      %p126 = scmp.eq.s32.totalorder %s20, 1
      %p127 = por %p125, %p126
      %p129 = scmp.ne.s32.totalorder %s114, %s128
      %p130 = scmp.eq.s32.totalorder %s20, 0
      %p131 = por %p129, %p130
      %s132 = ssub.s32 %s14, %s21
      %p133 = scmp.eq.s32.totalorder %s132, 0
      %s135 = sadd.s32 %s134, 1
      %s136 = scalar_select %p133, %s134, %s135
      %p139 = pneg %p133
      %p140 = scmp.eq.s32.totalorder %s14, 1
      %p141 = por %p139, %p140
      %p142 = scmp.ne.s32.totalorder %s134, %s137
      %p143 = scmp.eq.s32.totalorder %s14, 0
      %p144 = por %p142, %p143
      %p145 = scmp.ne.s32.totalorder %s134, %s137
      %p146 = scmp.eq.s32.totalorder %s19, 1
      %p147 = por %p145, %p146
      %p148 = scmp.ne.s32.totalorder %s137, %s138
      %p149 = scmp.eq.s32.totalorder %s19, 0
      %p150 = por %p148, %p149
      %p151 = scmp.ne.s32.totalorder %s137, %s138
      %p152 = scmp.eq.s32.totalorder %s20, 1
      %p153 = por %p151, %p152
      %p155 = scmp.ne.s32.totalorder %s138, %s154
      %p156 = scmp.eq.s32.totalorder %s20, 0
      %p157 = por %p155, %p156
      %p158 = scmp.le.s32.totalorder 1, %s14
      %p159 = scmp.lt.s32.totalorder %s14, 3
      %p160 = pnand %p158, %p159
      %p161 = pneg %p160
      // Predicated region
      $region9: #{model_forward.1} parent=5 // pred_check
        _
      $region10: #{model_forward.1} parent=5 // pred_check_branch
        %163 = sbr.rel (%p160) target = $region12
      $region11: #{model_forward.1} parent=5 // pred_region
        %s164 = ssub.s32 %s14, 1
        // Predicated region
        $region13: #{model_forward.1} parent=11 // pred_check
          %p165 = pneg %p61
        $region14: #{model_forward.1} parent=11 // pred_check_branch
          %167 = sbr.rel (%p165) target = $region16
        $region15: #{model_forward.1} parent=11 // pred_region
          _
        $region16: #{model_forward.1} parent=11 // pred_fallthru
          _
        // Predicated region
        $region17: #{model_forward.1} parent=11 // pred_check
          %p168 = pneg %p82
        $region18: #{model_forward.1} parent=11 // pred_check_branch
          %170 = sbr.rel (%p168) target = $region20
        $region19: #{model_forward.1} parent=11 // pred_region
          _
        $region20: #{model_forward.1} parent=11 // pred_fallthru
          _
        // Predicated region
        $region21: #{model_forward.1} parent=11 // pred_check
          %p171 = pneg %p103
        $region22: #{model_forward.1} parent=11 // pred_check_branch
          %173 = sbr.rel (%p171) target = $region24
        $region23: #{model_forward.1} parent=11 // pred_region
          _
        $region24: #{model_forward.1} parent=11 // pred_fallthru
          _
        // Predicated region
        $region25: #{model_forward.1} parent=11 // pred_check
          %p174 = pneg %p124
        $region26: #{model_forward.1} parent=11 // pred_check_branch
          %176 = sbr.rel (%p174) target = $region28
        $region27: #{model_forward.1} parent=11 // pred_region
          _
        $region28: #{model_forward.1} parent=11 // pred_fallthru
          _
      $region12: #{model_forward.1} parent=5 // pred_fallthru
        _
      %p177 = scmp.lt.s32.totalorder %s14, 2
      // Predicated region
      $region29: #{model_forward.1} parent=5 // pred_check
        %p178 = pneg %p177
      $region30: #{model_forward.1} parent=5 // pred_check_branch
        %180 = sbr.rel (%p178) target = $region32
      $region31: #{model_forward.1} parent=5 // pred_region
        // Predicated region
        $region33: #{model_forward.1} parent=31 // pred_check
          %p181 = pneg %p34
        $region34: #{model_forward.1} parent=31 // pred_check_branch
          %183 = sbr.rel (%p181) target = $region36
        $region35: #{model_forward.1} parent=31 // pred_region
          %s184 = smul.u32 8, %s14
          %p185 = scmp.lt.s32.totalorder %s184, 15
          %s186 = scalar_select %p185, %s184, 15
          %s187 = smul.addr %s186, 8
          %s188 = scalar_lea.vmem %s0, %s187
          %s189 = smul.u32 8, %s14
        $region36: #{model_forward.1} parent=31 // pred_fallthru
          _
      $region32: #{model_forward.1} parent=5 // pred_fallthru
        _
      %p190 = scmp.le.s32.totalorder 1, %s14
      %p191 = scmp.lt.s32.totalorder %s14, 3
      %p192 = pnand %p190, %p191
      %p193 = pneg %p192
      // Predicated region
      $region37: #{model_forward.1} parent=5 // pred_check
        _
      $region38: #{model_forward.1} parent=5 // pred_check_branch
        %195 = sbr.rel (%p192) target = $region40
      $region39: #{model_forward.1} parent=5 // pred_region
        %s196 = ssub.s32 %s14, 1
        %s197 = smul.u32 8, %s19
        %p198 = scmp.lt.s32.totalorder %s197, 15
        %s199 = scalar_select %p198, %s197, 15
        %s200 = smul.addr %s199, 8
        %s201 = scalar_lea.vmem %s0, %s200
        %p202 = pneg %p40
        %p203 = pneg %p37
        %p204 = pneg %p61
        %p205 = pneg %p58
        %p206 = pneg %p82
        %p207 = pneg %p79
        %p208 = pneg %p103
        %p209 = pneg %p100
        %p210 = pneg %p124
        %p211 = pneg %p121
        %p212 = pneg %p150
        %p213 = pneg %p147
        %s214 = sand.u32 %s137, 1
        %s215 = scalar_lea.sflag [#allocation4], %s214
        %s216 = sand.u32 %s137, 1
        %s217 = smul.addr %s216, 16
        %s218 = scalar_lea.vmem [#allocation3], %s217
        %s219 = smul.u32 8, %s19
        %p220 = scmp.lt.s32.totalorder %s219, 15
        %s221 = scalar_select %p220, %s219, 15
        %s222 = smul.addr %s221, 8
        %s223 = scalar_lea.vmem %s0, %s222
        %s224 = smul.u32 8, %s19
        %s225 = smul.u32 2, %s19
        %v226 = vld [vmem:[%s223] sm:$0xff]
        %v227 = vld [vmem:[%s223 + $0x8] sm:$0xff]
        %v228 = vld [vmem:[%s223 + $0x10] sm:$0xff]
        %v229 = vld [vmem:[%s223 + $0x18] sm:$0xff]
        %v230 = vld [vmem:[%s223 + $0x20] sm:$0xff]
        %v231 = vld [vmem:[%s223 + $0x28] sm:$0xff]
        %v232 = vld [vmem:[%s223 + $0x30] sm:$0xff]
        %v233 = vld [vmem:[%s223 + $0x38] sm:$0xff]
        %v234 = vld [vmem:[%s1] sm:$0xff]
        %v235 = vld [vmem:[%s1 + $0x8] sm:$0x1]
        %v236 = vld [vmem:[%s2] sm:$0x1]
        %v238 = vlaneseq
        %v239 = vshrl.u32 %v238, 7
        %v240 = vsub.s32 0, %v239
        %v241 = vrot.slane %v236, %v240
        %vm243 = vcmask 72704
        %v245 = vsel %vm243, %v226, 0
        %v248 = vsel %vm243, %v227, 0
        %v251 = vsel %vm243, %v228, 0
        %v254 = vsel %vm243, %v229, 0
        %v257 = vsel %vm243, %v230, 0
        %v260 = vsel %vm243, %v231, 0
        %v263 = vsel %vm243, %v232, 0
        %v266 = vsel %vm243, %v233, 0
        %vm268 = vcmask 1040384
        %v270 = vsel %vm268, %v235, 0
        %272 = vmatprep.subr.mxu0 0.0
        %273 = vmatpush1.msra.mxu0 %v234
        %274 = vmatprep.subr.mxu0 0.0
        %275 = vmatpush1.msra.mxu0 %v270
        %276 = vmatprep.subr.mxu0 0.0
        %277 = vmatpush1.msra.mxu0 0.0
        %278 = vmatprep.subr.mxu0 0.0
        %279 = vmatpush1.msra.mxu0 0.0
        %280 = vmatprep.subr.mxu0 0.0
        %281 = vmatpush1.msra.mxu0 0.0
        %282 = vmatprep.subr.mxu0 0.0
        %283 = vmatpush1.msra.mxu0 0.0
        %284 = vmatprep.subr.mxu0 0.0
        %285 = vmatpush1.msra.mxu0 0.0
        %286 = vmatprep.subr.mxu0 0.0
        %287 = vmatpush1.msra.mxu0 0.0
        %288 = vmatprep.subr.mxu0 0.0
        %289 = vmatpush1.msra.mxu0 0.0
        %290 = vmatprep.subr.mxu0 0.0
        %291 = vmatpush1.msra.mxu0 0.0
        %292 = vmatprep.subr.mxu0 0.0
        %293 = vmatpush1.msra.mxu0 0.0
        %294 = vmatprep.subr.mxu0 0.0
        %295 = vmatpush1.msra.mxu0 0.0
        %296 = vmatprep.subr.mxu0 0.0
        %297 = vmatpush1.msra.mxu0 0.0
        %298 = vmatprep.subr.mxu0 0.0
        %299 = vmatpush1.msra.mxu0 0.0
        %300 = vmatprep.subr.mxu0 0.0
        %301 = vmatpush1.msra.mxu0 0.0
        %302 = vmatprep.subr.mxu0 0.0
        %303 = vmatpush1.msra.mxu0 0.0
        %304 = vmatprep.subr.mxu0 0.0
        %305 = vmatpush1.msra.mxu0 0.0
        %306 = vmatprep.subr.mxu0 0.0
        %307 = vmatpush1.msra.mxu0 0.0
        %308 = vmatprep.subr.mxu0 0.0
        %309 = vmatpush1.msra.mxu0 0.0
        %310 = vmatprep.subr.mxu0 0.0
        %311 = vmatpush1.msra.mxu0 0.0
        %312 = vmatprep.subr.mxu0 0.0
        %313 = vmatpush1.msra.mxu0 0.0
        %314 = vmatprep.subr.mxu0 0.0
        %315 = vmatpush1.msra.mxu0 0.0
        %316 = vmatprep.subr.mxu0 0.0
        %317 = vmatpush1.msra.mxu0 0.0
        %318 = vmatprep.subr.mxu0 0.0
        %319 = vmatpush1.msra.mxu0 0.0
        %320 = vmatprep.subr.mxu0 0.0
        %321 = vmatpush1.msra.mxu0 0.0
        %322 = vmatprep.subr.mxu0 0.0
        %323 = vmatpush1.msra.mxu0 0.0
        %324 = vmatprep.subr.mxu0 0.0
        %325 = vmatpush1.msra.mxu0 0.0
        %326 = vmatprep.subr.mxu0 0.0
        %327 = vmatpush1.msra.mxu0 0.0
        %328 = vmatprep.subr.mxu0 0.0
        %329 = vmatpush1.msra.mxu0 0.0
        %330 = vmatprep.subr.mxu0 0.0
        %331 = vmatpush1.msra.mxu0 0.0
        %332 = vmatprep.subr.mxu0 0.0
        %333 = vmatpush1.msra.mxu0 0.0
        %334 = vmatprep.subr.mxu0 0.0
        %335 = vmatpush1.msra.mxu0 0.0
        %336 = vmatprep.mubr.f32.mxu0 0.0
        %337 = vmatmul.mubr.f32.gmra.mrb[0].mxu0 %v245
        %v338 = vpop.f32.mrb[0].mxu0
        %v339 = vadd.f32 %v241, %v338
        %v340 = vpop.f32.mrb[0].mxu0
        %341 = vmatprep.mubr.f32.mxu0 0.0
        %342 = vmatmul.mubr.f32.gmra.mrb[0].mxu0 %v248
        %v343 = vpop.f32.mrb[0].mxu0
        %v344 = vadd.f32 %v241, %v343
        %v345 = vpop.f32.mrb[0].mxu0
        %346 = vmatprep.mubr.f32.mxu0 0.0
        %347 = vmatmul.mubr.f32.gmra.mrb[0].mxu0 %v251
        %v348 = vpop.f32.mrb[0].mxu0
        %v349 = vadd.f32 %v241, %v348
        %v350 = vpop.f32.mrb[0].mxu0
        %351 = vmatprep.mubr.f32.mxu0 0.0
        %352 = vmatmul.mubr.f32.gmra.mrb[0].mxu0 %v254
        %v353 = vpop.f32.mrb[0].mxu0
        %v354 = vadd.f32 %v241, %v353
        %v355 = vpop.f32.mrb[0].mxu0
        %356 = vmatprep.mubr.f32.mxu0 0.0
        %357 = vmatmul.mubr.f32.gmra.mrb[0].mxu0 %v257
        %v358 = vpop.f32.mrb[0].mxu0
        %v359 = vadd.f32 %v241, %v358
        %v360 = vpop.f32.mrb[0].mxu0
        %361 = vmatprep.mubr.f32.mxu0 0.0
        %362 = vmatmul.mubr.f32.gmra.mrb[0].mxu0 %v260
        %v363 = vpop.f32.mrb[0].mxu0
        %v364 = vadd.f32 %v241, %v363
        %v365 = vpop.f32.mrb[0].mxu0
        %366 = vmatprep.mubr.f32.mxu0 0.0
        %367 = vmatmul.mubr.f32.gmra.mrb[0].mxu0 %v263
        %v368 = vpop.f32.mrb[0].mxu0
        %v369 = vadd.f32 %v241, %v368
        %v370 = vpop.f32.mrb[0].mxu0
        %371 = vmatprep.mubr.f32.mxu0 0.0
        %372 = vmatmul.mubr.f32.gmra.mrb[0].mxu0 %v266
        %v373 = vpop.f32.mrb[0].mxu0
        %v374 = vadd.f32 %v241, %v373
        %v375 = vpop.f32.mrb[0].mxu0
        %376 = vdwg.mxu0
        %v377 = vmul.f32 %v339, 0.5
        %v378 = vmul.f32 %v344, 0.5
        %v379 = vmul.f32 %v349, 0.5
        %v380 = vmul.f32 %v354, 0.5
        %v381 = vmul.f32 %v359, 0.5
        %v382 = vmul.f32 %v364, 0.5
        %v383 = vmul.f32 %v369, 0.5
        %v384 = vmul.f32 %v374, 0.5
        %v385 = vmul.f32 %v339, 0.70710677
        %v386 = vmul.f32 %v344, 0.70710677
        %v387 = vmul.f32 %v349, 0.70710677
        %v388 = vmul.f32 %v354, 0.70710677
        %v389 = vmul.f32 %v359, 0.70710677
        %v390 = vmul.f32 %v364, 0.70710677
        %v391 = vmul.f32 %v369, 0.70710677
        %v392 = vmul.f32 %v374, 0.70710677
        %v393 = verf.f32.pop %v385
        %v394 = verf.f32.pop %v386
        %v395 = verf.f32.pop %v387
        %v396 = verf.f32.pop %v388
        %v397 = verf.f32.pop %v389
        %v398 = verf.f32.pop %v390
        %v399 = verf.f32.pop %v391
        %v400 = verf.f32.pop %v392
        %v401 = vadd.f32 %v393, 1.0
        %v402 = vadd.f32 %v394, 1.0
        %v403 = vadd.f32 %v395, 1.0
        %v404 = vadd.f32 %v396, 1.0
        %v405 = vadd.f32 %v397, 1.0
        %v406 = vadd.f32 %v398, 1.0
        %v407 = vadd.f32 %v399, 1.0
        %v408 = vadd.f32 %v400, 1.0
        %v409 = vmul.f32 %v377, %v401
        %v410 = vmul.f32 %v378, %v402
        %v411 = vmul.f32 %v379, %v403
        %v412 = vmul.f32 %v380, %v404
        %v413 = vmul.f32 %v381, %v405
        %v414 = vmul.f32 %v382, %v406
        %v415 = vmul.f32 %v383, %v407
        %v416 = vmul.f32 %v384, %v408
        %417 = vst [vmem:[#allocation2] sm:$0xff] %v409
        %418 = vst [vmem:[#allocation2 + $0x8] sm:$0xff] %v410
        %419 = vst [vmem:[#allocation2 + $0x10] sm:$0xff] %v411
        %420 = vst [vmem:[#allocation2 + $0x18] sm:$0xff] %v412
        %421 = vst [vmem:[#allocation2 + $0x20] sm:$0xff] %v413
        %422 = vst [vmem:[#allocation2 + $0x28] sm:$0xff] %v414
        %423 = vst [vmem:[#allocation2 + $0x30] sm:$0xff] %v415
        %424 = vst [vmem:[#allocation2 + $0x38] sm:$0xff] %v416
        %v425 = vlaneseq
        %v426 = vshrl.u32 %v425, 7
        %v427 = vadd.s32 %v426, 8
        %vm428 = vcmp.lt.s32.totalorder %v426, 0
        %v429 = vsub.s32 0, %v426
        %v430 = vsel %vm428, %v429, %v426
        %v431 = vshrl.u32 %v430, 2
        %v432 = vand.u32 %v430, 3
        %v433 = vsub.s32 0, %v432
        %v434 = vsel %vm428, %v433, %v432
        %vm435 = vcmp.lt.s32.totalorder %v427, 0
        %v436 = vsub.s32 0, %v427
        %v437 = vsel %vm435, %v436, %v427
        %v438 = vshrl.u32 %v437, 2
        %v439 = vand.u32 %v437, 3
        %v440 = vsub.s32 0, %v439
        %v441 = vsel %vm435, %v440, %v439
        %vm442 = vcmp.ne.s32.totalorder %v434, 0
        %vm443 = vcmp.ne.s32.totalorder %v441, 0
        %vm444 = vcmp.lt.s32.totalorder %v434, 0
        %vm445 = vcmp.lt.s32.totalorder %v441, 0
        %vm446 = vmand %vm444, %vm442
        %vm447 = vmand %vm445, %vm443
        %v448 = vadd.s32 %v434, 4
        %v449 = vadd.s32 %v441, 4
        %v450 = vsel %vm446, %v448, %v434
        %v451 = vsel %vm447, %v449, %v441
        %vm452 = vcmp.ne.s32.totalorder %v450, 0
        %vm453 = vcmp.ne.s32.totalorder %v451, 0
        %vm454 = vcmp.ge.s32.totalorder %v426, 4
        %vm455 = vcmp.ge.s32.totalorder %v427, 4
        %v456 = vld [vmem:[#allocation2 + $0x2b] sm:$0xff]
        %v457 = vld [vmem:[#allocation2 + $0x33] sm:$0xff]
        %vm458 = vmand %vm454, %vm452
        %vm459 = vmand %vm455, %vm453
        %v460 = vsel %vm458, 1, 0
        %v461 = vsel %vm459, 1, 0
        %vm462 = vcmp.eq.s32.totalorder %v460, 1
        %vm463 = vcmp.eq.s32.totalorder %v461, 1
        %v464 = vsel %vm462, %v456, 0.0
        %v465 = vsel %vm463, %v457, 0.0
        %v466 = vld [vmem:[#allocation2 + $0x1c] sm:$0xff]
        %v467 = vld [vmem:[#allocation2 + $0x24] sm:$0xff]
        %v468 = vsel %vm454, 1, 0
        %v469 = vsel %vm455, 1, 0
        %vm470 = vcmp.eq.s32.totalorder %v468, 1
        %vm471 = vcmp.eq.s32.totalorder %v469, 1
        %v472 = vsel %vm470, %v466, 0.0
        %v473 = vsel %vm471, %v467, 0.0
        %v474 = vld [vmem:[#allocation2 + $0x2c] sm:$0xff]
        %v475 = vld [vmem:[#allocation2 + $0x34] sm:$0xff]
        %v476 = vsel %vm470, %v474, 0.0
        %v477 = vsel %vm471, %v475, 0.0
        %v478 = vld [vmem:[%s3] sm:$0xff]
        %v479 = vld [vmem:[%s3 + $0x8] sm:$0xff]
        %v480 = vld [vmem:[%s3 + $0x10] sm:$0xff]
        %v481 = vld [vmem:[%s3 + $0x18] sm:$0xff]
        %v482 = vld [vmem:[%s3 + $0x20] sm:$0xff]
        %v483 = vld [vmem:[%s3 + $0x28] sm:$0xff]
        %v484 = vld [vmem:[%s3 + $0x30] sm:$0xff]
        %v485 = vld [vmem:[%s3 + $0x38] sm:$0xff]
        %v486 = vld [vmem:[%s3 + $0x40] sm:$0xff]
        %v487 = vld [vmem:[%s3 + $0x48] sm:$0xff]
        %v488 = vld [vmem:[%s3 + $0x50] sm:$0xff]
        %v489 = vld [vmem:[%s3 + $0x58] sm:$0xff]
        %v490 = vld [vmem:[%s3 + $0x60] sm:$0xff]
        %v491 = vld [vmem:[%s3 + $0x68] sm:$0xff]
        %v492 = vld [vmem:[%s3 + $0x70] sm:$0xff]
        %v493 = vld [vmem:[%s3 + $0x78] sm:$0xff]
        %v494 = vld [vmem:[%s3 + $0x80] sm:$0xff]
        %v495 = vld [vmem:[%s3 + $0x88] sm:$0xff]
        %v496 = vld [vmem:[%s3 + $0x90] sm:$0xff]
        %v497 = vld [vmem:[%s3 + $0x98] sm:$0xff]
        %v498 = vld [vmem:[%s3 + $0xa0] sm:$0xff]
        %v499 = vld [vmem:[%s3 + $0xa8] sm:$0xff]
        %v500 = vld [vmem:[%s3 + $0xb0] sm:$0xff]
        %v501 = vld [vmem:[%s3 + $0xb8] sm:$0xff]
        %v502 = vld [vmem:[%s3 + $0xc0] sm:$0xff]
        %v503 = vld [vmem:[%s3 + $0xc8] sm:$0xff]
        %v504 = vld [vmem:[%s3 + $0xd0] sm:$0xff]
        %v505 = vld [vmem:[%s3 + $0xd8] sm:$0xff]
        %v506 = vld [vmem:[%s3 + $0xe0] sm:$0xff]
        %v507 = vld [vmem:[%s3 + $0xe8] sm:$0xff]
        %v508 = vld [vmem:[%s3 + $0xf0] sm:$0xff]
        %v509 = vld [vmem:[%s3 + $0xf8] sm:$0xff]
        %v510 = vld [vmem:[%s3 + $0x100] sm:$0xff]
        %v511 = vld [vmem:[%s3 + $0x108] sm:$0xff]
        %v512 = vld [vmem:[%s3 + $0x110] sm:$0xff]
        %v513 = vld [vmem:[%s3 + $0x118] sm:$0xff]
        %v514 = vld [vmem:[%s3 + $0x120] sm:$0xff]
        %v515 = vld [vmem:[%s3 + $0x128] sm:$0xff]
        %v516 = vld [vmem:[%s3 + $0x130] sm:$0xff]
        %v517 = vld [vmem:[%s3 + $0x138] sm:$0xff]
        %v518 = vld [vmem:[%s3 + $0x140] sm:$0xff]
        %v519 = vld [vmem:[%s3 + $0x148] sm:$0xff]
        %v520 = vld [vmem:[%s3 + $0x150] sm:$0xff]
        %v521 = vld [vmem:[%s3 + $0x158] sm:$0xff]
        %v522 = vld [vmem:[%s3 + $0x160] sm:$0xff]
        %v523 = vld [vmem:[%s3 + $0x168] sm:$0xff]
        %v524 = vld [vmem:[%s3 + $0x170] sm:$0xff]
        %v525 = vld [vmem:[%s3 + $0x178] sm:$0xff]
        %v526 = vld [vmem:[#allocation2 + $0xf] sm:$0xff]
        %v527 = vld [vmem:[#allocation2 + $0x17] sm:$0xff]
        %v528 = vsel %vm452, 1, 0
        %v529 = vsel %vm453, 1, 0
        %vm530 = vcmp.eq.s32.totalorder %v528, 1
        %vm531 = vcmp.eq.s32.totalorder %v529, 1
        %v532 = vsel %vm530, %v526, 0.0
        %v533 = vsel %vm531, %v527, 0.0
        %v534 = vld [vmem:[#allocation2] sm:$0xff]
        %v535 = vld [vmem:[#allocation2 + $0x8] sm:$0xff]
        %v536 = vld [vmem:[#allocation2 + $0x10] sm:$0xff]
        %v537 = vld [vmem:[#allocation2 + $0x18] sm:$0xff]
        %s538 = scalar_lea.vmem %s3, 384
        %v539 = vld [vmem:[%s538] sm:$0xff]
        %v540 = vld [vmem:[%s538 + $0x8] sm:$0xff]
        %v541 = vld [vmem:[%s538 + $0x10] sm:$0xff]
        %v542 = vld [vmem:[%s538 + $0x18] sm:$0xff]
        %v543 = vld [vmem:[%s538 + $0x20] sm:$0xff]
        %v544 = vld [vmem:[%s538 + $0x28] sm:$0xff]
        %v545 = vld [vmem:[%s538 + $0x30] sm:$0xff]
        %v546 = vld [vmem:[%s538 + $0x38] sm:$0xff]
        %v547 = vld [vmem:[%s538 + $0x40] sm:$0xff]
        %v548 = vld [vmem:[%s538 + $0x48] sm:$0xff]
        %v549 = vld [vmem:[%s538 + $0x50] sm:$0xff]
        %v550 = vld [vmem:[%s538 + $0x58] sm:$0xff]
        %v551 = vld [vmem:[%s538 + $0x60] sm:$0xff]
        %v552 = vld [vmem:[%s538 + $0x68] sm:$0xff]
        %v553 = vld [vmem:[%s538 + $0x70] sm:$0xff]
        %v554 = vld [vmem:[%s538 + $0x78] sm:$0xff]
        %v555 = vld [vmem:[%s538 + $0x80] sm:$0xff]
        %v556 = vld [vmem:[%s538 + $0x88] sm:$0xff]
        %v557 = vld [vmem:[%s538 + $0x90] sm:$0xff]
        %v558 = vld [vmem:[%s538 + $0x98] sm:$0xff]
        %v559 = vld [vmem:[%s538 + $0xa0] sm:$0xff]
        %v560 = vld [vmem:[%s538 + $0xa8] sm:$0xff]
        %v561 = vld [vmem:[%s538 + $0xb0] sm:$0xff]
        %v562 = vld [vmem:[%s538 + $0xb8] sm:$0xff]
        %v563 = vld [vmem:[%s538 + $0xc0] sm:$0xff]
        %v564 = vld [vmem:[%s538 + $0xc8] sm:$0xff]
        %v565 = vld [vmem:[%s538 + $0xd0] sm:$0xff]
        %v566 = vld [vmem:[%s538 + $0xd8] sm:$0xff]
        %v567 = vld [vmem:[%s538 + $0xe0] sm:$0xff]
        %v568 = vld [vmem:[%s538 + $0xe8] sm:$0xff]
        %v569 = vld [vmem:[%s538 + $0xf0] sm:$0xff]
        %v570 = vld [vmem:[%s538 + $0xf8] sm:$0xff]
        %v571 = vld [vmem:[%s538 + $0x100] sm:$0xff]
        %v572 = vld [vmem:[%s538 + $0x108] sm:$0xff]
        %v573 = vld [vmem:[%s538 + $0x110] sm:$0xff]
        %v574 = vld [vmem:[%s538 + $0x118] sm:$0xff]
        %v575 = vld [vmem:[%s538 + $0x120] sm:$0xff]
        %v576 = vld [vmem:[%s538 + $0x128] sm:$0xff]
        %v577 = vld [vmem:[%s538 + $0x130] sm:$0xff]
        %v578 = vld [vmem:[%s538 + $0x138] sm:$0xff]
        %v579 = vld [vmem:[%s538 + $0x140] sm:$0xff]
        %v580 = vld [vmem:[%s538 + $0x148] sm:$0xff]
        %v581 = vld [vmem:[%s538 + $0x150] sm:$0xff]
        %v582 = vld [vmem:[%s538 + $0x158] sm:$0xff]
        %v583 = vld [vmem:[%s538 + $0x160] sm:$0xff]
        %v584 = vld [vmem:[%s538 + $0x168] sm:$0xff]
        %v585 = vld [vmem:[%s538 + $0x170] sm:$0xff]
        %v586 = vld [vmem:[%s538 + $0x178] sm:$0xff]
        %587 = vmatprep.subr.mxu0 0.0
        %588 = vmatpush1.msra.mxu0 %v539
        %589 = vmatprep.subr.mxu0 0.0
        %590 = vmatpush1.msra.mxu0 %v540
        %591 = vmatprep.subr.mxu0 0.0
        %592 = vmatpush1.msra.mxu0 %v541
        %593 = vmatprep.subr.mxu0 0.0
        %594 = vmatpush1.msra.mxu0 %v542
        %595 = vmatprep.subr.mxu0 0.0
        %596 = vmatpush1.msra.mxu0 %v543
        %597 = vmatprep.subr.mxu0 0.0
        %598 = vmatpush1.msra.mxu0 %v544
        %599 = vmatprep.subr.mxu0 0.0
        %600 = vmatpush1.msra.mxu0 %v545
        %601 = vmatprep.subr.mxu0 0.0
        %602 = vmatpush1.msra.mxu0 %v546
        %603 = vmatprep.subr.mxu0 0.0
        %604 = vmatpush1.msra.mxu0 %v547
        %605 = vmatprep.subr.mxu0 0.0
        %606 = vmatpush1.msra.mxu0 %v548
        %607 = vmatprep.subr.mxu0 0.0
        %608 = vmatpush1.msra.mxu0 %v549
        %609 = vmatprep.subr.mxu0 0.0
        %610 = vmatpush1.msra.mxu0 %v550
        %611 = vmatprep.subr.mxu0 0.0
        %612 = vmatpush1.msra.mxu0 %v551
        %613 = vmatprep.subr.mxu0 0.0
        %614 = vmatpush1.msra.mxu0 %v552
        %615 = vmatprep.subr.mxu0 0.0
        %616 = vmatpush1.msra.mxu0 %v553
        %617 = vmatprep.subr.mxu0 0.0
        %618 = vmatpush1.msra.mxu0 %v554
        %619 = vmatprep.subr.mxu0 0.0
        %620 = vmatpush1.msra.mxu0 %v555
        %621 = vmatprep.subr.mxu0 0.0
        %622 = vmatpush1.msra.mxu0 %v556
        %623 = vmatprep.subr.mxu0 0.0
        %624 = vmatpush1.msra.mxu0 %v557
        %625 = vmatprep.subr.mxu0 0.0
        %626 = vmatpush1.msra.mxu0 %v558
        %627 = vmatprep.subr.mxu0 0.0
        %628 = vmatpush1.msra.mxu0 %v559
        %629 = vmatprep.subr.mxu0 0.0
        %630 = vmatpush1.msra.mxu0 %v560
        %631 = vmatprep.subr.mxu0 0.0
        %632 = vmatpush1.msra.mxu0 %v561
        %633 = vmatprep.subr.mxu0 0.0
        %634 = vmatpush1.msra.mxu0 %v562
        %635 = vmatprep.subr.mxu0 0.0
        %636 = vmatpush1.msra.mxu0 %v563
        %637 = vmatprep.subr.mxu0 0.0
        %638 = vmatpush1.msra.mxu0 %v564
        %639 = vmatprep.subr.mxu0 0.0
        %640 = vmatpush1.msra.mxu0 %v565
        %641 = vmatprep.subr.mxu0 0.0
        %642 = vmatpush1.msra.mxu0 %v566
        %643 = vmatprep.subr.mxu0 0.0
        %644 = vmatpush1.msra.mxu0 %v567
        %645 = vmatprep.subr.mxu0 0.0
        %646 = vmatpush1.msra.mxu0 %v568
        %647 = vmatprep.subr.mxu0 0.0
        %648 = vmatpush1.msra.mxu0 %v569
        %649 = vmatprep.subr.mxu0 0.0
        %650 = vmatpush1.msra.mxu0 %v570
        %651 = vmatprep.mubr.f32.mxu0 %v534
        %652 = vmatmul.mubr.f32.gmra.mrb[0].mxu0 %v532
        %v653 = vpop.f32.mrb[0].mxu0
        %v654 = vadd.f32 0.0, %v653
        %v655 = vpop.f32.mrb[0].mxu0
        %656 = vmatprep.mubr.f32.mxu0 %v535
        %657 = vmatmul.mubr.f32.gmra.mrb[0].mxu0 %v533
        %v658 = vpop.f32.mrb[0].mxu0
        %v659 = vadd.f32 0.0, %v658
        %v660 = vpop.f32.mrb[0].mxu0
        %661 = vdwg.mxu0
        %662 = vmatprep.subr.mxu0 0.0
        %663 = vmatpush1.msra.mxu0 %v571
        %664 = vmatprep.subr.mxu0 0.0
        %665 = vmatpush1.msra.mxu0 %v572
        %666 = vmatprep.subr.mxu0 0.0
        %667 = vmatpush1.msra.mxu0 %v573
        %668 = vmatprep.subr.mxu0 0.0
        %669 = vmatpush1.msra.mxu0 %v574
        %670 = vmatprep.subr.mxu0 0.0
        %671 = vmatpush1.msra.mxu0 %v575
        %672 = vmatprep.subr.mxu0 0.0
        %673 = vmatpush1.msra.mxu0 %v576
        %674 = vmatprep.subr.mxu0 0.0
        %675 = vmatpush1.msra.mxu0 %v577
        %676 = vmatprep.subr.mxu0 0.0
        %677 = vmatpush1.msra.mxu0 %v578
        %678 = vmatprep.subr.mxu0 0.0
        %679 = vmatpush1.msra.mxu0 %v579
        %680 = vmatprep.subr.mxu0 0.0
        %681 = vmatpush1.msra.mxu0 %v580
        %682 = vmatprep.subr.mxu0 0.0
        %683 = vmatpush1.msra.mxu0 %v581
        %684 = vmatprep.subr.mxu0 0.0
        %685 = vmatpush1.msra.mxu0 %v582
        %686 = vmatprep.subr.mxu0 0.0
        %687 = vmatpush1.msra.mxu0 %v583
        %688 = vmatprep.subr.mxu0 0.0
        %689 = vmatpush1.msra.mxu0 %v584
        %690 = vmatprep.subr.mxu0 0.0
        %691 = vmatpush1.msra.mxu0 %v585
        %692 = vmatprep.subr.mxu0 0.0
        %693 = vmatpush1.msra.mxu0 %v586
        %694 = vmatprep.subr.mxu0 0.0
        %695 = vmatpush1.msra.mxu0 0.0
        %696 = vmatprep.subr.mxu0 0.0
        %697 = vmatpush1.msra.mxu0 0.0
        %698 = vmatprep.subr.mxu0 0.0
        %699 = vmatpush1.msra.mxu0 0.0
        %700 = vmatprep.subr.mxu0 0.0
        %701 = vmatpush1.msra.mxu0 0.0
        %702 = vmatprep.subr.mxu0 0.0
        %703 = vmatpush1.msra.mxu0 0.0
        %704 = vmatprep.subr.mxu0 0.0
        %705 = vmatpush1.msra.mxu0 0.0
        %706 = vmatprep.subr.mxu0 0.0
        %707 = vmatpush1.msra.mxu0 0.0
        %708 = vmatprep.subr.mxu0 0.0
        %709 = vmatpush1.msra.mxu0 0.0
        %710 = vmatprep.subr.mxu0 0.0
        %711 = vmatpush1.msra.mxu0 0.0
        %712 = vmatprep.subr.mxu0 0.0
        %713 = vmatpush1.msra.mxu0 0.0
        %714 = vmatprep.subr.mxu0 0.0
        %715 = vmatpush1.msra.mxu0 0.0
        %716 = vmatprep.subr.mxu0 0.0
        %717 = vmatpush1.msra.mxu0 0.0
        %718 = vmatprep.subr.mxu0 0.0
        %719 = vmatpush1.msra.mxu0 0.0
        %720 = vmatprep.subr.mxu0 0.0
        %721 = vmatpush1.msra.mxu0 0.0
        %722 = vmatprep.subr.mxu0 0.0
        %723 = vmatpush1.msra.mxu0 0.0
        %724 = vmatprep.subr.mxu0 0.0
        %725 = vmatpush1.msra.mxu0 0.0
        %726 = vmatprep.mubr.f32.mxu0 0.0
        %727 = vmatmul.mubr.f32.gmra.mrb[0].mxu0 %v536
        %v728 = vpop.f32.mrb[0].mxu0
        %v729 = vadd.f32 %v654, %v728
        %v730 = vpop.f32.mrb[0].mxu0
        %731 = vmatprep.mubr.f32.mxu0 0.0
        %732 = vmatmul.mubr.f32.gmra.mrb[0].mxu0 %v537
        %v733 = vpop.f32.mrb[0].mxu0
        %v734 = vadd.f32 %v659, %v733
        %v735 = vpop.f32.mrb[0].mxu0
        %736 = vdwg.mxu0
        %737 = vmatprep.subr.mxu0 0.0
        %738 = vmatpush1.msra.mxu0 %v478
        %739 = vmatprep.subr.mxu0 0.0
        %740 = vmatpush1.msra.mxu0 %v479
        %741 = vmatprep.subr.mxu0 0.0
        %742 = vmatpush1.msra.mxu0 %v480
        %743 = vmatprep.subr.mxu0 0.0
        %744 = vmatpush1.msra.mxu0 %v481
        %745 = vmatprep.subr.mxu0 0.0
        %746 = vmatpush1.msra.mxu0 %v482
        %747 = vmatprep.subr.mxu0 0.0
        %748 = vmatpush1.msra.mxu0 %v483
        %749 = vmatprep.subr.mxu0 0.0
        %750 = vmatpush1.msra.mxu0 %v484
        %751 = vmatprep.subr.mxu0 0.0
        %752 = vmatpush1.msra.mxu0 %v485
        %753 = vmatprep.subr.mxu0 0.0
        %754 = vmatpush1.msra.mxu0 %v486
        %755 = vmatprep.subr.mxu0 0.0
        %756 = vmatpush1.msra.mxu0 %v487
        %757 = vmatprep.subr.mxu0 0.0
        %758 = vmatpush1.msra.mxu0 %v488
        %759 = vmatprep.subr.mxu0 0.0
        %760 = vmatpush1.msra.mxu0 %v489
        %761 = vmatprep.subr.mxu0 0.0
        %762 = vmatpush1.msra.mxu0 %v490
        %763 = vmatprep.subr.mxu0 0.0
        %764 = vmatpush1.msra.mxu0 %v491
        %765 = vmatprep.subr.mxu0 0.0
        %766 = vmatpush1.msra.mxu0 %v492
        %767 = vmatprep.subr.mxu0 0.0
        %768 = vmatpush1.msra.mxu0 %v493
        %769 = vmatprep.subr.mxu0 0.0
        %770 = vmatpush1.msra.mxu0 %v494
        %771 = vmatprep.subr.mxu0 0.0
        %772 = vmatpush1.msra.mxu0 %v495
        %773 = vmatprep.subr.mxu0 0.0
        %774 = vmatpush1.msra.mxu0 %v496
        %775 = vmatprep.subr.mxu0 0.0
        %776 = vmatpush1.msra.mxu0 %v497
        %777 = vmatprep.subr.mxu0 0.0
        %778 = vmatpush1.msra.mxu0 %v498
        %779 = vmatprep.subr.mxu0 0.0
        %780 = vmatpush1.msra.mxu0 %v499
        %781 = vmatprep.subr.mxu0 0.0
        %782 = vmatpush1.msra.mxu0 %v500
        %783 = vmatprep.subr.mxu0 0.0
        %784 = vmatpush1.msra.mxu0 %v501
        %785 = vmatprep.subr.mxu0 0.0
        %786 = vmatpush1.msra.mxu0 %v502
        %787 = vmatprep.subr.mxu0 0.0
        %788 = vmatpush1.msra.mxu0 %v503
        %789 = vmatprep.subr.mxu0 0.0
        %790 = vmatpush1.msra.mxu0 %v504
        %791 = vmatprep.subr.mxu0 0.0
        %792 = vmatpush1.msra.mxu0 %v505
        %793 = vmatprep.subr.mxu0 0.0
        %794 = vmatpush1.msra.mxu0 %v506
        %795 = vmatprep.subr.mxu0 0.0
        %796 = vmatpush1.msra.mxu0 %v507
        %797 = vmatprep.subr.mxu0 0.0
        %798 = vmatpush1.msra.mxu0 %v508
        %799 = vmatprep.subr.mxu0 0.0
        %800 = vmatpush1.msra.mxu0 %v509
        %801 = vmatprep.mubr.f32.mxu0 %v472
        %802 = vmatmul.mubr.f32.gmra.mrb[0].mxu0 %v464
        %v803 = vpop.f32.mrb[0].mxu0
        %v804 = vadd.f32 %v729, %v803
        %v805 = vpop.f32.mrb[0].mxu0
        %806 = vmatprep.mubr.f32.mxu0 %v473
        %807 = vmatmul.mubr.f32.gmra.mrb[0].mxu0 %v465
        %v808 = vpop.f32.mrb[0].mxu0
        %v809 = vadd.f32 %v734, %v808
        %v810 = vpop.f32.mrb[0].mxu0
        %811 = vdwg.mxu0
        %812 = vmatprep.subr.mxu0 0.0
        %813 = vmatpush1.msra.mxu0 %v510
        %814 = vmatprep.subr.mxu0 0.0
        %815 = vmatpush1.msra.mxu0 %v511
        %816 = vmatprep.subr.mxu0 0.0
        %817 = vmatpush1.msra.mxu0 %v512
        %818 = vmatprep.subr.mxu0 0.0
        %819 = vmatpush1.msra.mxu0 %v513
        %820 = vmatprep.subr.mxu0 0.0
        %821 = vmatpush1.msra.mxu0 %v514
        %822 = vmatprep.subr.mxu0 0.0
        %823 = vmatpush1.msra.mxu0 %v515
        %824 = vmatprep.subr.mxu0 0.0
        %825 = vmatpush1.msra.mxu0 %v516
        %826 = vmatprep.subr.mxu0 0.0
        %827 = vmatpush1.msra.mxu0 %v517
        %828 = vmatprep.subr.mxu0 0.0
        %829 = vmatpush1.msra.mxu0 %v518
        %830 = vmatprep.subr.mxu0 0.0
        %831 = vmatpush1.msra.mxu0 %v519
        %832 = vmatprep.subr.mxu0 0.0
        %833 = vmatpush1.msra.mxu0 %v520
        %834 = vmatprep.subr.mxu0 0.0
        %835 = vmatpush1.msra.mxu0 %v521
        %836 = vmatprep.subr.mxu0 0.0
        %837 = vmatpush1.msra.mxu0 %v522
        %838 = vmatprep.subr.mxu0 0.0
        %839 = vmatpush1.msra.mxu0 %v523
        %840 = vmatprep.subr.mxu0 0.0
        %841 = vmatpush1.msra.mxu0 %v524
        %842 = vmatprep.subr.mxu0 0.0
        %843 = vmatpush1.msra.mxu0 %v525
        %844 = vmatprep.subr.mxu0 0.0
        %845 = vmatpush1.msra.mxu0 0.0
        %846 = vmatprep.subr.mxu0 0.0
        %847 = vmatpush1.msra.mxu0 0.0
        %848 = vmatprep.subr.mxu0 0.0
        %849 = vmatpush1.msra.mxu0 0.0
        %850 = vmatprep.subr.mxu0 0.0
        %851 = vmatpush1.msra.mxu0 0.0
        %852 = vmatprep.subr.mxu0 0.0
        %853 = vmatpush1.msra.mxu0 0.0
        %854 = vmatprep.subr.mxu0 0.0
        %855 = vmatpush1.msra.mxu0 0.0
        %856 = vmatprep.subr.mxu0 0.0
        %857 = vmatpush1.msra.mxu0 0.0
        %858 = vmatprep.subr.mxu0 0.0
        %859 = vmatpush1.msra.mxu0 0.0
        %860 = vmatprep.subr.mxu0 0.0
        %861 = vmatpush1.msra.mxu0 0.0
        %862 = vmatprep.subr.mxu0 0.0
        %863 = vmatpush1.msra.mxu0 0.0
        %864 = vmatprep.subr.mxu0 0.0
        %865 = vmatpush1.msra.mxu0 0.0
        %866 = vmatprep.subr.mxu0 0.0
        %867 = vmatpush1.msra.mxu0 0.0
        %868 = vmatprep.subr.mxu0 0.0
        %869 = vmatpush1.msra.mxu0 0.0
        %870 = vmatprep.subr.mxu0 0.0
        %871 = vmatpush1.msra.mxu0 0.0
        %872 = vmatprep.subr.mxu0 0.0
        %873 = vmatpush1.msra.mxu0 0.0
        %874 = vmatprep.subr.mxu0 0.0
        %875 = vmatpush1.msra.mxu0 0.0
        %876 = vmatprep.mubr.f32.mxu0 0.0
        %877 = vmatmul.mubr.f32.gmra.mrb[0].mxu0 %v476
        %v878 = vpop.f32.mrb[0].mxu0
        %v879 = vadd.f32 %v804, %v878
        %v880 = vpop.f32.mrb[0].mxu0
        %881 = vmatprep.mubr.f32.mxu0 0.0
        %882 = vmatmul.mubr.f32.gmra.mrb[0].mxu0 %v477
        %v883 = vpop.f32.mrb[0].mxu0
        %v884 = vadd.f32 %v809, %v883
        %v885 = vpop.f32.mrb[0].mxu0
        %886 = vdwg.mxu0
        %v887 = vld [vmem:[#allocation2 + $0x2f] sm:$0xff]
        %v888 = vld [vmem:[#allocation2 + $0x37] sm:$0xff]
        %v889 = vsel %vm530, %v887, 0.0
        %v890 = vsel %vm531, %v888, 0.0
        %v891 = vld [vmem:[#allocation2 + $0x20] sm:$0xff]
        %v892 = vld [vmem:[#allocation2 + $0x28] sm:$0xff]
        %v893 = vld [vmem:[#allocation2 + $0x30] sm:$0xff]
        %v894 = vld [vmem:[#allocation2 + $0x38] sm:$0xff]
        %s895 = scalar_lea.vmem %s3, 768
        %v896 = vld [vmem:[%s895] sm:$0xff]
        %v897 = vld [vmem:[%s895 + $0x8] sm:$0xff]
        %v898 = vld [vmem:[%s895 + $0x10] sm:$0xff]
        %v899 = vld [vmem:[%s895 + $0x18] sm:$0xff]
        %v900 = vld [vmem:[%s895 + $0x20] sm:$0xff]
        %v901 = vld [vmem:[%s895 + $0x28] sm:$0xff]
        %v902 = vld [vmem:[%s895 + $0x30] sm:$0xff]
        %v903 = vld [vmem:[%s895 + $0x38] sm:$0xff]
        %v904 = vld [vmem:[%s895 + $0x40] sm:$0xff]
        %v905 = vld [vmem:[%s895 + $0x48] sm:$0xff]
        %v906 = vld [vmem:[%s895 + $0x50] sm:$0xff]
        %v907 = vld [vmem:[%s895 + $0x58] sm:$0xff]
        %v908 = vld [vmem:[%s895 + $0x60] sm:$0xff]
        %v909 = vld [vmem:[%s895 + $0x68] sm:$0xff]
        %v910 = vld [vmem:[%s895 + $0x70] sm:$0xff]
        %v911 = vld [vmem:[%s895 + $0x78] sm:$0xff]
        %v912 = vld [vmem:[%s895 + $0x80] sm:$0xff]
        %v913 = vld [vmem:[%s895 + $0x88] sm:$0xff]
        %v914 = vld [vmem:[%s895 + $0x90] sm:$0xff]
        %v915 = vld [vmem:[%s895 + $0x98] sm:$0xff]
        %v916 = vld [vmem:[%s895 + $0xa0] sm:$0xff]
        %v917 = vld [vmem:[%s895 + $0xa8] sm:$0xff]
        %v918 = vld [vmem:[%s895 + $0xb0] sm:$0xff]
        %v919 = vld [vmem:[%s895 + $0xb8] sm:$0xff]
        %v920 = vld [vmem:[%s895 + $0xc0] sm:$0xff]
        %v921 = vld [vmem:[%s895 + $0xc8] sm:$0xff]
        %v922 = vld [vmem:[%s895 + $0xd0] sm:$0xff]
        %v923 = vld [vmem:[%s895 + $0xd8] sm:$0xff]
        %v924 = vld [vmem:[%s895 + $0xe0] sm:$0xff]
        %v925 = vld [vmem:[%s895 + $0xe8] sm:$0xff]
        %v926 = vld [vmem:[%s895 + $0xf0] sm:$0xff]
        %v927 = vld [vmem:[%s895 + $0xf8] sm:$0xff]
        %v928 = vld [vmem:[%s895 + $0x100] sm:$0xff]
        %v929 = vld [vmem:[%s895 + $0x108] sm:$0xff]
        %v930 = vld [vmem:[%s895 + $0x110] sm:$0xff]
        %v931 = vld [vmem:[%s895 + $0x118] sm:$0xff]
        %v932 = vld [vmem:[%s895 + $0x120] sm:$0xff]
        %v933 = vld [vmem:[%s895 + $0x128] sm:$0xff]
        %v934 = vld [vmem:[%s895 + $0x130] sm:$0xff]
        %v935 = vld [vmem:[%s895 + $0x138] sm:$0xff]
        %v936 = vld [vmem:[%s895 + $0x140] sm:$0xff]
        %v937 = vld [vmem:[%s895 + $0x148] sm:$0xff]
        %v938 = vld [vmem:[%s895 + $0x150] sm:$0xff]
        %v939 = vld [vmem:[%s895 + $0x158] sm:$0xff]
        %v940 = vld [vmem:[%s895 + $0x160] sm:$0xff]
        %v941 = vld [vmem:[%s895 + $0x168] sm:$0xff]
        %v942 = vld [vmem:[%s895 + $0x170] sm:$0xff]
        %v943 = vld [vmem:[%s895 + $0x178] sm:$0xff]
        %944 = vmatprep.subr.mxu0 0.0
        %945 = vmatpush1.msra.mxu0 %v896
        %946 = vmatprep.subr.mxu0 0.0
        %947 = vmatpush1.msra.mxu0 %v897
        %948 = vmatprep.subr.mxu0 0.0
        %949 = vmatpush1.msra.mxu0 %v898
        %950 = vmatprep.subr.mxu0 0.0
        %951 = vmatpush1.msra.mxu0 %v899
        %952 = vmatprep.subr.mxu0 0.0
        %953 = vmatpush1.msra.mxu0 %v900
        %954 = vmatprep.subr.mxu0 0.0
        %955 = vmatpush1.msra.mxu0 %v901
        %956 = vmatprep.subr.mxu0 0.0
        %957 = vmatpush1.msra.mxu0 %v902
        %958 = vmatprep.subr.mxu0 0.0
        %959 = vmatpush1.msra.mxu0 %v903
        %960 = vmatprep.subr.mxu0 0.0
        %961 = vmatpush1.msra.mxu0 %v904
        %962 = vmatprep.subr.mxu0 0.0
        %963 = vmatpush1.msra.mxu0 %v905
        %964 = vmatprep.subr.mxu0 0.0
        %965 = vmatpush1.msra.mxu0 %v906
        %966 = vmatprep.subr.mxu0 0.0
        %967 = vmatpush1.msra.mxu0 %v907
        %968 = vmatprep.subr.mxu0 0.0
        %969 = vmatpush1.msra.mxu0 %v908
        %970 = vmatprep.subr.mxu0 0.0
        %971 = vmatpush1.msra.mxu0 %v909
        %972 = vmatprep.subr.mxu0 0.0
        %973 = vmatpush1.msra.mxu0 %v910
        %974 = vmatprep.subr.mxu0 0.0
        %975 = vmatpush1.msra.mxu0 %v911
        %976 = vmatprep.subr.mxu0 0.0
        %977 = vmatpush1.msra.mxu0 %v912
        %978 = vmatprep.subr.mxu0 0.0
        %979 = vmatpush1.msra.mxu0 %v913
        %980 = vmatprep.subr.mxu0 0.0
        %981 = vmatpush1.msra.mxu0 %v914
        %982 = vmatprep.subr.mxu0 0.0
        %983 = vmatpush1.msra.mxu0 %v915
        %984 = vmatprep.subr.mxu0 0.0
        %985 = vmatpush1.msra.mxu0 %v916
        %986 = vmatprep.subr.mxu0 0.0
        %987 = vmatpush1.msra.mxu0 %v917
        %988 = vmatprep.subr.mxu0 0.0
        %989 = vmatpush1.msra.mxu0 %v918
        %990 = vmatprep.subr.mxu0 0.0
        %991 = vmatpush1.msra.mxu0 %v919
        %992 = vmatprep.subr.mxu0 0.0
        %993 = vmatpush1.msra.mxu0 %v920
        %994 = vmatprep.subr.mxu0 0.0
        %995 = vmatpush1.msra.mxu0 %v921
        %996 = vmatprep.subr.mxu0 0.0
        %997 = vmatpush1.msra.mxu0 %v922
        %998 = vmatprep.subr.mxu0 0.0
        %999 = vmatpush1.msra.mxu0 %v923
        %1000 = vmatprep.subr.mxu0 0.0
        %1001 = vmatpush1.msra.mxu0 %v924
        %1002 = vmatprep.subr.mxu0 0.0
        %1003 = vmatpush1.msra.mxu0 %v925
        %1004 = vmatprep.subr.mxu0 0.0
        %1005 = vmatpush1.msra.mxu0 %v926
        %1006 = vmatprep.subr.mxu0 0.0
        %1007 = vmatpush1.msra.mxu0 %v927
        %1008 = vmatprep.mubr.f32.mxu0 %v891
        %1009 = vmatmul.mubr.f32.gmra.mrb[0].mxu0 %v889
        %v1010 = vpop.f32.mrb[0].mxu0
        %v1011 = vadd.f32 0.0, %v1010
        %v1012 = vpop.f32.mrb[0].mxu0
        %1013 = vmatprep.mubr.f32.mxu0 %v892
        %1014 = vmatmul.mubr.f32.gmra.mrb[0].mxu0 %v890
        %v1015 = vpop.f32.mrb[0].mxu0
        %v1016 = vadd.f32 0.0, %v1015
        %v1017 = vpop.f32.mrb[0].mxu0
        %1018 = vdwg.mxu0
        %1019 = vmatprep.subr.mxu0 0.0
        %1020 = vmatpush1.msra.mxu0 %v928
        %1021 = vmatprep.subr.mxu0 0.0
        %1022 = vmatpush1.msra.mxu0 %v929
        %1023 = vmatprep.subr.mxu0 0.0
        %1024 = vmatpush1.msra.mxu0 %v930
        %1025 = vmatprep.subr.mxu0 0.0
        %1026 = vmatpush1.msra.mxu0 %v931
        %1027 = vmatprep.subr.mxu0 0.0
        %1028 = vmatpush1.msra.mxu0 %v932
        %1029 = vmatprep.subr.mxu0 0.0
        %1030 = vmatpush1.msra.mxu0 %v933
        %1031 = vmatprep.subr.mxu0 0.0
        %1032 = vmatpush1.msra.mxu0 %v934
        %1033 = vmatprep.subr.mxu0 0.0
        %1034 = vmatpush1.msra.mxu0 %v935
        %1035 = vmatprep.subr.mxu0 0.0
        %1036 = vmatpush1.msra.mxu0 %v936
        %1037 = vmatprep.subr.mxu0 0.0
        %1038 = vmatpush1.msra.mxu0 %v937
        %1039 = vmatprep.subr.mxu0 0.0
        %1040 = vmatpush1.msra.mxu0 %v938
        %1041 = vmatprep.subr.mxu0 0.0
        %1042 = vmatpush1.msra.mxu0 %v939
        %1043 = vmatprep.subr.mxu0 0.0
        %1044 = vmatpush1.msra.mxu0 %v940
        %1045 = vmatprep.subr.mxu0 0.0
        %1046 = vmatpush1.msra.mxu0 %v941
        %1047 = vmatprep.subr.mxu0 0.0
        %1048 = vmatpush1.msra.mxu0 %v942
        %1049 = vmatprep.subr.mxu0 0.0
        %1050 = vmatpush1.msra.mxu0 %v943
        %1051 = vmatprep.subr.mxu0 0.0
        %1052 = vmatpush1.msra.mxu0 0.0
        %1053 = vmatprep.subr.mxu0 0.0
        %1054 = vmatpush1.msra.mxu0 0.0
        %1055 = vmatprep.subr.mxu0 0.0
        %1056 = vmatpush1.msra.mxu0 0.0
        %1057 = vmatprep.subr.mxu0 0.0
        %1058 = vmatpush1.msra.mxu0 0.0
        %1059 = vmatprep.subr.mxu0 0.0
        %1060 = vmatpush1.msra.mxu0 0.0
        %1061 = vmatprep.subr.mxu0 0.0
        %1062 = vmatpush1.msra.mxu0 0.0
        %1063 = vmatprep.subr.mxu0 0.0
        %1064 = vmatpush1.msra.mxu0 0.0
        %1065 = vmatprep.subr.mxu0 0.0
        %1066 = vmatpush1.msra.mxu0 0.0
        %1067 = vmatprep.subr.mxu0 0.0
        %1068 = vmatpush1.msra.mxu0 0.0
        %1069 = vmatprep.subr.mxu0 0.0
        %1070 = vmatpush1.msra.mxu0 0.0
        %1071 = vmatprep.subr.mxu0 0.0
        %1072 = vmatpush1.msra.mxu0 0.0
        %1073 = vmatprep.subr.mxu0 0.0
        %1074 = vmatpush1.msra.mxu0 0.0
        %1075 = vmatprep.subr.mxu0 0.0
        %1076 = vmatpush1.msra.mxu0 0.0
        %1077 = vmatprep.subr.mxu0 0.0
        %1078 = vmatpush1.msra.mxu0 0.0
        %1079 = vmatprep.subr.mxu0 0.0
        %1080 = vmatpush1.msra.mxu0 0.0
        %1081 = vmatprep.subr.mxu0 0.0
        %1082 = vmatpush1.msra.mxu0 0.0
        %1083 = vmatprep.mubr.f32.mxu0 0.0
        %1084 = vmatmul.mubr.f32.gmra.mrb[0].mxu0 %v893
        %v1085 = vpop.f32.mrb[0].mxu0
        %v1086 = vadd.f32 %v1011, %v1085
        %v1087 = vpop.f32.mrb[0].mxu0
        %1088 = vmatprep.mubr.f32.mxu0 0.0
        %1089 = vmatmul.mubr.f32.gmra.mrb[0].mxu0 %v894
        %v1090 = vpop.f32.mrb[0].mxu0
        %v1091 = vadd.f32 %v1016, %v1090
        %v1092 = vpop.f32.mrb[0].mxu0
        %1093 = vdwg.mxu0
        %v1094 = vadd.f32 %v879, %v1086
        %v1095 = vadd.f32 %v884, %v1091
        %v1096 = vld [vmem:[%s4] sm:$0x1]
        %v1098 = vlaneseq
        %v1099 = vshrl.u32 %v1098, 7
        %v1100 = vsub.s32 0, %v1099
        %v1101 = vrot.slane %v1096, %v1100
        %v1103 = vadd.f32 %v1094, %v1101
        %v1104 = vadd.f32 %v1095, %v1101
        %v1105 = vxor.u32 %v1103, 2147483648
        %v1106 = vxor.u32 %v1104, 2147483648
        %v1107 = vmul.f32 %v1105, 1.442695
        %v1108 = vpow.pop %v1107
        %v1109 = vmul.f32 %v1106, 1.442695
        %v1110 = vpow.pop %v1109
        %v1111 = vadd.f32 %v1108, 1.0
        %v1112 = vadd.f32 %v1110, 1.0
        %v1113 = vrcp.pop %v1111
        %v1114 = vmul.f32 1.0, %v1113
        %v1115 = vrcp.pop %v1112
        %v1116 = vmul.f32 1.0, %v1115
        %1117 = vst [vmem:[%s218] sm:$0xff] %v1114
        %1118 = vst [vmem:[%s218 + $0x8] sm:$0xff] %v1116
        %s1119 = sand.u32 %s137, 1
        %s1120 = scalar_lea.sflag [#allocation4], %s1119
        %s1121 = sand.u32 %s137, 1
        %s1122 = smul.addr %s1121, 16
        %s1123 = scalar_lea.vmem [#allocation3], %s1122
        // Predicated region
        $region41: #{model_forward.1} parent=39 // pred_check
          %p1124 = pneg %p147
        $region42: #{model_forward.1} parent=39 // pred_check_branch
          %1126 = sbr.rel (%p1124) target = $region44
        $region43: #{model_forward.1} parent=39 // pred_region
          %s1127 = smul.u32 2, %s19
          %s1129 = ssub.s32 256, 256
          %1130 = vsyncadd %s1120, %s1129
          %s1131 = smul.addr %s1127, 128
          %s1132 = scalar_lea.hbm %s5, %s1131
          %s1133 = sshll.u32 %s1123, 4
          %s1134 = int_to_ptr.vmem [resolvable:$true] %s1133
          %1139 = dma.vmem_to_hbm [thread:$0]  %s1134, 256, %s1132, %s1120, 128, 128, 8
        $region44: #{model_forward.1} parent=39 // pred_fallthru
          _
      $region40: #{model_forward.1} parent=5 // pred_fallthru
        _
      %p1140 = scmp.le.s32.totalorder 2, %s14
      // Predicated region
      $region45: #{model_forward.1} parent=5 // pred_check
        %p1141 = pneg %p1140
      $region46: #{model_forward.1} parent=5 // pred_check_branch
        %1143 = sbr.rel (%p1141) target = $region48
      $region47: #{model_forward.1} parent=5 // pred_region
        %s1144 = ssub.s32 %s14, 2
        // Predicated region
        $region49: #{model_forward.1} parent=47 // pred_check
          %p1145 = pneg %p153
        $region50: #{model_forward.1} parent=47 // pred_check_branch
          %1147 = sbr.rel (%p1145) target = $region52
        $region51: #{model_forward.1} parent=47 // pred_region
          %s1148 = sand.u32 %s138, 1
          %s1149 = scalar_lea.sflag [#allocation4], %s1148
          %s1150 = sand.u32 %s138, 1
          %s1151 = smul.addr %s1150, 16
          %s1152 = scalar_lea.vmem [#allocation3], %s1151
          %1153 = dma.done %s1149, 256
        $region52: #{model_forward.1} parent=47 // pred_fallthru
          _
      $region48: #{model_forward.1} parent=5 // pred_fallthru
        _
    $region6: #{model_forward.1} parent=1 // loop_footer
      %s18 = sadd.s32 1, %s14
    $region7: #{model_forward.1} parent=1 // loop_footer_branch
      %13 = sbr.rel target = $region3
    $region8: #{model_forward.1} parent=1 // loop_exit
      _
    %1154 = vsyncpa [#allocation4], 1
    %s1155 = scalar_lea.sflag [#allocation4], 1
    %1156 = vsyncpa %s1155, 1

</llo_original>
